<compile_context>
chip_gen: v5e
topology: v5e:2x2
jax: 0.10.0
libtpu: 0.0.40
codegen_flags: <defaults>
</compile_context>

<pallas_src>
import functools

import jax
import jax.numpy as jnp
from jax.experimental import pallas as pl
from jax.experimental.pallas import tpu as pltpu

EPS = 1e-5


def _basic_block_kernel(xt_ref, w_ref, idn_ref, scale_ref, bias_ref, o_ref,
                        *, tile_h, W, C):
    # xt_ref    : (1, 1, tile_h+2, W+2, C)  zero-padded input tile with row halo (NHWC)
    # w_ref     : (9*C, C)                  conv weight, rows ordered (kh, kw, Cin)
    # idn_ref   : (1, tile_h, W, C)         identity-branch tile
    # scale/bias: (1, C)                    folded BatchNorm (eval) constants
    # o_ref     : (1, tile_h, W, C)
    x = xt_ref[0, 0]                                        # (tile_h+2, W+2, C)

    # im2col: build one (tile_h*W, 9C) block and do a single MXU matmul (K = 9C).
    cols = []
    for kh in range(3):
        for kw in range(3):
            cols.append(x[kh:kh + tile_h, kw:kw + W, :].reshape(tile_h * W, C))
    patches = jnp.concatenate(cols, axis=-1)                # (tile_h*W, 9C)

    y = jnp.dot(patches, w_ref[...], preferred_element_type=jnp.float32)
    y = y * scale_ref[...] + bias_ref[...]                  # folded BatchNorm2d (eval)
    y = y + idn_ref[...].reshape(tile_h * W, C)             # residual add
    y = jnp.maximum(y, 0.0)                                 # ReLU
    o_ref[...] = y.reshape(1, tile_h, W, C).astype(o_ref.dtype)


def basic_block_u(x0_nchw, x1_nchw, weight_oihw, gamma, beta, mean, var,
                  *, tile_h=8):
    """x0, x1: (N, C, H, W) float32. Returns (N, C, H, W) float32.

    tile_h: target H-rows per grid tile (largest divisor of H <= tile_h is used).
    On v7x (64 MiB VMEM/TC) keep tile_h modest; on v5e/v6e it can be doubled.
    """
    N, C, H, W = x0_nchw.shape

    th = min(tile_h, H)
    while H % th:
        th -= 1
    nH = H // th

    # NCHW -> NHWC, zero pad H/W by 1 for the 3x3 conv.
    x0 = jnp.transpose(x0_nchw, (0, 2, 3, 1)).astype(jnp.float32)
    x1 = jnp.transpose(x1_nchw, (0, 2, 3, 1)).astype(jnp.float32)
    x0_pad = jnp.pad(x0, ((0, 0), (1, 1), (1, 1), (0, 0)))

    # Duplicate the 1-row halos so each (n, i) grid tile is a standard Blocked block
    # of shape (th+2, W+2, C).
    row_idx = jnp.arange(nH)[:, None] * th + jnp.arange(th + 2)[None, :]
    x_tiles = x0_pad[:, row_idx]                            # (N, nH, th+2, W+2, C)

    # (Cout, Cin, kh, kw) -> (kh, kw, Cin, Cout) -> (9*Cin, Cout)
    w = jnp.transpose(weight_oihw, (2, 3, 1, 0)).reshape(9 * C, C).astype(jnp.float32)

    # Fold BN (eval mode): y = conv * scale + bias.
    inv = jax.lax.rsqrt(var.astype(jnp.float32) + EPS)
    scale = (gamma.astype(jnp.float32) * inv).reshape(1, C)
    bias = (beta.astype(jnp.float32) - mean.astype(jnp.float32) * scale[0]).reshape(1, C)

    kernel = functools.partial(_basic_block_kernel, tile_h=th, W=W, C=C)

    out_nhwc = pl.pallas_call(
        kernel,
        out_shape=jax.ShapeDtypeStruct((N, H, W, C), jnp.float32),
        grid=(N, nH),
        in_specs=[
            pl.BlockSpec((1, 1, th + 2, W + 2, C), lambda n, i: (n, i, 0, 0, 0)),
            pl.BlockSpec((9 * C, C), lambda n, i: (0, 0)),
            pl.BlockSpec((1, th, W, C), lambda n, i: (n, i, 0, 0)),
            pl.BlockSpec((1, C), lambda n, i: (0, 0)),
            pl.BlockSpec((1, C), lambda n, i: (0, 0)),
        ],
        out_specs=pl.BlockSpec((1, th, W, C), lambda n, i: (n, i, 0, 0)),
        compiler_params=pltpu.CompilerParams(
            dimension_semantics=("parallel", "parallel"),
            vmem_limit_bytes=32 * 1024 * 1024,
        ),
    )(x_tiles, w, x1, scale, bias)

    # TODO(synk): if the surrounding model can stay NHWC, drop these NCHW<->NHWC
    # transposes (they are full HBM passes around a memory-bound kernel).
    return jnp.transpose(out_nhwc, (0, 3, 1, 2))


def _reference(x0_nchw, x1_nchw, weight_oihw, gamma, beta, mean, var):
    out = jax.lax.conv_general_dilated(
        x0_nchw, weight_oihw, window_strides=(1, 1), padding=((1, 1), (1, 1)),
        dimension_numbers=("NCHW", "OIHW", "NCHW"))
    g = gamma.reshape(1, -1, 1, 1)
    b = beta.reshape(1, -1, 1, 1)
    m = mean.reshape(1, -1, 1, 1)
    v = var.reshape(1, -1, 1, 1)
    out = (out - m) * g / jnp.sqrt(v + EPS) + b
    return jnp.maximum(out + x1_nchw, 0.0)


if __name__ == "__main__":
    key = jax.random.PRNGKey(0)
    k0, k1, k2, k3, k4, k5, k6 = jax.random.split(key, 7)

    N, C, H, W = 2, 4, 16, 16  # planes = 4

    x0 = jax.random.normal(k0, (N, C, H, W), dtype=jnp.float32)
    x1 = jax.random.normal(k1, (N, C, H, W), dtype=jnp.float32)

    # conv3x3(planes, planes) weights, bias=False; deterministic init.
    weight = jax.random.normal(k2, (C, C, 3, 3), dtype=jnp.float32) * 0.1

    # BatchNorm2d params (eval-mode semantics; training-mode batch stats not modeled).
    gamma = 1.0 + 0.1 * jax.random.normal(k3, (C,), dtype=jnp.float32)
    beta = 0.1 * jax.random.normal(k4, (C,), dtype=jnp.float32)
    mean = 0.1 * jax.random.normal(k5, (C,), dtype=jnp.float32)
    var = jnp.abs(1.0 + 0.1 * jax.random.normal(k6, (C,), dtype=jnp.float32))

    out = basic_block_u(x0, x1, weight, gamma, beta, mean, var)
    out = jax.block_until_ready(out)

    ref = _reference(x0, x1, weight, gamma, beta, mean, var)
    assert out.shape == (N, C, H, W)
    assert jnp.max(jnp.abs(out - ref)) < 1e-4

    print("KERNEL_OK")
</pallas_src>

<mosaic_0001>
module attributes {stable_mosaic.version = 11 : i64} {
  func.func @_basic_block_kernel(%arg0: i32, %arg1: i32, %arg2: memref<1x1x10x18x4xf32, #tpu.memory_space<vmem>>, %arg3: memref<36x4xf32, #tpu.memory_space<vmem>>, %arg4: memref<1x8x16x4xf32, #tpu.memory_space<vmem>>, %arg5: memref<1x4xf32, #tpu.memory_space<vmem>>, %arg6: memref<1x4xf32, #tpu.memory_space<vmem>>, %arg7: memref<1x8x16x4xf32, #tpu.memory_space<vmem>>) attributes {dimension_semantics = [#tpu.dimension_semantics<parallel>, #tpu.dimension_semantics<parallel>], iteration_bounds = array<i64: 2, 2>, scalar_prefetch = 0 : i64, scratch_operands = 0 : i64, tpu.core_type = #tpu.core_type<tc>, window_params = [{transform_indices = @transform_0, window_bounds = array<i64: 1, 1, 10, 18, 4>}, {pipeline_mode = #tpu.pipeline_mode<synchronous>, transform_indices = @transform_1, window_bounds = array<i64: 36, 4>}, {transform_indices = @transform_2, window_bounds = array<i64: 1, 8, 16, 4>}, {pipeline_mode = #tpu.pipeline_mode<synchronous>, transform_indices = @transform_3, window_bounds = array<i64: 1, 4>}, {pipeline_mode = #tpu.pipeline_mode<synchronous>, transform_indices = @transform_4, window_bounds = array<i64: 1, 4>}, {transform_indices = @transform_5, window_bounds = array<i64: 1, 8, 16, 4>}]} {
    %c0 = arith.constant 0 : index
    %c0_0 = arith.constant 0 : index
    %c0_1 = arith.constant 0 : index
    %c0_2 = arith.constant 0 : index
    %c0_3 = arith.constant 0 : index
    %0 = vector.load %arg2[%c0, %c0_0, %c0_1, %c0_2, %c0_3] : memref<1x1x10x18x4xf32, #tpu.memory_space<vmem>>, vector<1x1x10x18x4xf32>
    %1 = vector.shape_cast %0 : vector<1x1x10x18x4xf32> to vector<10x18x4xf32>
    %2 = vector.extract_strided_slice %1 {offsets = [0, 0, 0], sizes = [8, 16, 4], strides = [1, 1, 1]} : vector<10x18x4xf32> to vector<8x16x4xf32>
    %3 = vector.shape_cast %2 : vector<8x16x4xf32> to vector<128x4xf32>
    %4 = vector.extract_strided_slice %1 {offsets = [0, 1, 0], sizes = [8, 16, 4], strides = [1, 1, 1]} : vector<10x18x4xf32> to vector<8x16x4xf32>
    %5 = vector.shape_cast %4 : vector<8x16x4xf32> to vector<128x4xf32>
    %6 = vector.extract_strided_slice %1 {offsets = [0, 2, 0], sizes = [8, 16, 4], strides = [1, 1, 1]} : vector<10x18x4xf32> to vector<8x16x4xf32>
    %7 = vector.shape_cast %6 : vector<8x16x4xf32> to vector<128x4xf32>
    %8 = vector.extract_strided_slice %1 {offsets = [1, 0, 0], sizes = [8, 16, 4], strides = [1, 1, 1]} : vector<10x18x4xf32> to vector<8x16x4xf32>
    %9 = vector.shape_cast %8 : vector<8x16x4xf32> to vector<128x4xf32>
    %10 = vector.extract_strided_slice %1 {offsets = [1, 1, 0], sizes = [8, 16, 4], strides = [1, 1, 1]} : vector<10x18x4xf32> to vector<8x16x4xf32>
    %11 = vector.shape_cast %10 : vector<8x16x4xf32> to vector<128x4xf32>
    %12 = vector.extract_strided_slice %1 {offsets = [1, 2, 0], sizes = [8, 16, 4], strides = [1, 1, 1]} : vector<10x18x4xf32> to vector<8x16x4xf32>
    %13 = vector.shape_cast %12 : vector<8x16x4xf32> to vector<128x4xf32>
    %14 = vector.extract_strided_slice %1 {offsets = [2, 0, 0], sizes = [8, 16, 4], strides = [1, 1, 1]} : vector<10x18x4xf32> to vector<8x16x4xf32>
    %15 = vector.shape_cast %14 : vector<8x16x4xf32> to vector<128x4xf32>
    %16 = vector.extract_strided_slice %1 {offsets = [2, 1, 0], sizes = [8, 16, 4], strides = [1, 1, 1]} : vector<10x18x4xf32> to vector<8x16x4xf32>
    %17 = vector.shape_cast %16 : vector<8x16x4xf32> to vector<128x4xf32>
    %18 = vector.extract_strided_slice %1 {offsets = [2, 2, 0], sizes = [8, 16, 4], strides = [1, 1, 1]} : vector<10x18x4xf32> to vector<8x16x4xf32>
    %19 = vector.shape_cast %18 : vector<8x16x4xf32> to vector<128x4xf32>
    %20 = tpu.concatenate %3, %5, %7, %9, %11, %13, %15, %17, %19 in 1 : vector<128x4xf32>, vector<128x4xf32>, vector<128x4xf32>, vector<128x4xf32>, vector<128x4xf32>, vector<128x4xf32>, vector<128x4xf32>, vector<128x4xf32>, vector<128x4xf32> -> vector<128x36xf32>
    %c0_4 = arith.constant 0 : index
    %c0_5 = arith.constant 0 : index
    %21 = vector.load %arg3[%c0_4, %c0_5] : memref<36x4xf32, #tpu.memory_space<vmem>>, vector<36x4xf32>
    %cst = arith.constant dense<0.000000e+00> : vector<128x4xf32>
    %22 = tpu.matmul %20, %21, %cst {dimension_numbers = #tpu.dot_dimension_numbers<[1], [0], [0], [1], [0, 0, 1, 1], [], []>} : vector<128x36xf32>, vector<36x4xf32>, vector<128x4xf32> -> vector<128x4xf32>
    %c0_6 = arith.constant 0 : index
    %c0_7 = arith.constant 0 : index
    %23 = vector.load %arg5[%c0_6, %c0_7] : memref<1x4xf32, #tpu.memory_space<vmem>>, vector<1x4xf32>
    %24 = vector.broadcast %23 : vector<1x4xf32> to vector<128x4xf32>
    %25 = arith.mulf %22, %24 : vector<128x4xf32>
    %c0_8 = arith.constant 0 : index
    %c0_9 = arith.constant 0 : index
    %26 = vector.load %arg6[%c0_8, %c0_9] : memref<1x4xf32, #tpu.memory_space<vmem>>, vector<1x4xf32>
    %27 = vector.broadcast %26 : vector<1x4xf32> to vector<128x4xf32>
    %28 = arith.addf %25, %27 : vector<128x4xf32>
    %c0_10 = arith.constant 0 : index
    %c0_11 = arith.constant 0 : index
    %c0_12 = arith.constant 0 : index
    %c0_13 = arith.constant 0 : index
    %29 = vector.load %arg4[%c0_10, %c0_11, %c0_12, %c0_13] : memref<1x8x16x4xf32, #tpu.memory_space<vmem>>, vector<1x8x16x4xf32>
    %30 = vector.shape_cast %29 : vector<1x8x16x4xf32> to vector<128x4xf32>
    %31 = arith.addf %28, %30 : vector<128x4xf32>
    %cst_14 = arith.constant 0.000000e+00 : f32
    %32 = vector.broadcast %cst_14 : f32 to vector<128x4xf32>
    %33 = arith.maximumf %31, %32 : vector<128x4xf32>
    %34 = vector.shape_cast %33 : vector<128x4xf32> to vector<1x8x16x4xf32>
    %c0_15 = arith.constant 0 : index
    %c0_16 = arith.constant 0 : index
    %c0_17 = arith.constant 0 : index
    %c0_18 = arith.constant 0 : index
    %35 = vector.load %arg7[%c0_15, %c0_16, %c0_17, %c0_18] : memref<1x8x16x4xf32, #tpu.memory_space<vmem>>, vector<1x8x16x4xf32>
    tpu.vector_store %arg7[%c0_15, %c0_16, %c0_17, %c0_18], %34 {strides = array<i32>} : memref<1x8x16x4xf32, #tpu.memory_space<vmem>>, vector<1x8x16x4xf32>,
    return
  }
  func.func @transform_0(%arg0: i32, %arg1: i32) -> (i32, i32, i32, i32, i32) {
    %c0_i32 = arith.constant 0 : i32
    %c0_i32_0 = arith.constant 0 : i32
    %c0_i32_1 = arith.constant 0 : i32
    %c0_i32_2 = arith.constant 0 : i32
    return %arg0, %arg1, %c0_i32, %c0_i32_0, %c0_i32_1 : i32, i32, i32, i32, i32
  }
  func.func @transform_1(%arg0: i32, %arg1: i32) -> (i32, i32) {
    %c0_i32 = arith.constant 0 : i32
    %c0_i32_0 = arith.constant 0 : i32
    %c0_i32_1 = arith.constant 0 : i32
    return %c0_i32, %c0_i32_0 : i32, i32
  }
  func.func @transform_2(%arg0: i32, %arg1: i32) -> (i32, i32, i32, i32) {
    %c0_i32 = arith.constant 0 : i32
    %c0_i32_0 = arith.constant 0 : i32
    %c0_i32_1 = arith.constant 0 : i32
    return %arg0, %arg1, %c0_i32, %c0_i32_0 : i32, i32, i32, i32
  }
  func.func @transform_3(%arg0: i32, %arg1: i32) -> (i32, i32) {
    %c0_i32 = arith.constant 0 : i32
    %c0_i32_0 = arith.constant 0 : i32
    %c0_i32_1 = arith.constant 0 : i32
    return %c0_i32, %c0_i32_0 : i32, i32
  }
  func.func @transform_4(%arg0: i32, %arg1: i32) -> (i32, i32) {
    %c0_i32 = arith.constant 0 : i32
    %c0_i32_0 = arith.constant 0 : i32
    %c0_i32_1 = arith.constant 0 : i32
    return %c0_i32, %c0_i32_0 : i32, i32
  }
  func.func @transform_5(%arg0: i32, %arg1: i32) -> (i32, i32, i32, i32) {
    %c0_i32 = arith.constant 0 : i32
    %c0_i32_0 = arith.constant 0 : i32
    %c0_i32_1 = arith.constant 0 : i32
    return %arg0, %arg1, %c0_i32, %c0_i32_0 : i32, i32, i32, i32
  }
}

</mosaic_0001>

<llo_original>
// kernel: tpu_custom_call.1
$region0: #{tpu_custom_call.1}
  #allocation0 [shape = 'u32[]', space=smem, size = 0x4, offset = 0x4, fixed_abs, tag = 'smem constant byte address 0x4 - core index']
  #allocation1 [shape = 'u32[72,128]{1,0:T(1,128)}', space=vmem, size = 0x9000, scoped, tag = 'internal scratch']
  %s0 = inlined_call_operand.vmem [shape: f32[2,2,10,18,4], index: 0, kind: input, shape index: {}]
  %s1 = inlined_call_operand.vmem [shape: f32[36,4], index: 1, kind: input, shape index: {}]
  %s2 = inlined_call_operand.vmem [shape: f32[2,16,16,4], index: 2, kind: input, shape index: {}]
  %s3 = inlined_call_operand.vmem [shape: f32[1,4], index: 3, kind: input, shape index: {}]
  %s4 = inlined_call_operand.vmem [shape: f32[1,4], index: 4, kind: input, shape index: {}]
  %s5 = inlined_call_operand.vmem [shape: f32[2,16,16,4], index: 5, kind: output, shape index: {}]
  %s6 = sld [smem:[#allocation0]]
  $region53: #{tpu_custom_call.1} parent=0
    _
  %s8 = ssub.s32 1, %s6
  %s9 = scalar_select 0, %s8, %s6
  loop: start=0, step=1, limit=6
  $region2: #{tpu_custom_call.1} parent=0 // loop_pre_header
    _
  $region3: #{tpu_custom_call.1} parent=0 // loop_header
    %s11 = sphi 0, %s15
    %p12 = scmp.ge.s32.totalorder %s11, 6
    %s18 = sphi 0, %s30
    %s19 = sphi 0, %s26
    %s20 = sphi 0, %s18
    %s21 = sphi 0, %s19
    %s22 = sphi 0, %s20
    %s23 = sphi 0, %s21
    %s35 = sphi 0, %s37
    %s38 = sphi 0, %s35
    %s39 = sphi 0, %s38
    %s55 = sphi 0, %s39
    %s59 = sphi 0, %s59
    %s61 = sphi 0, %s59
    %s62 = sphi 0, %s61
    %s76 = sphi 0, %s62
    %s84 = sphi 0, %s86
    %s87 = sphi 0, %s84
    %s88 = sphi 0, %s87
    %s104 = sphi 0, %s88
    %s108 = sphi 0, %s108
    %s110 = sphi 0, %s108
    %s111 = sphi 0, %s110
    %s125 = sphi 0, %s111
    %s129 = sphi 0, %s129
    %s131 = sphi 0, %s129
    %s132 = sphi 0, %s131
    %s146 = sphi 0, %s132
    %s154 = sphi 0, %s156
    %s157 = sphi 0, %s154
    %s158 = sphi 0, %s157
    %s174 = sphi 0, %s158
  $region4: #{tpu_custom_call.1} parent=0 // loop_header_branch
    %14 = sbr.rel (%p12) target = $region8
  $region5: #{tpu_custom_call.1} parent=0 // loop_body
    %s16 = ssub.s32 %s11, 1
    %s17 = ssub.s32 %s11, 2
    %s24 = sadd.s32 1, %s19
    %p25 = scmp.ge.s32.totalorder %s24, 2
    %s26 = scalar_select %p25, 0, %s24
    %s27 = sadd.s32 1, %s18
    %s28 = scalar_select %p25, %s27, %s18
    %p29 = scmp.ge.s32.totalorder %s28, 2
    %s30 = scalar_select %p29, 0, %s28
    %s31 = ssub.s32 %s18, %s30
    %s32 = ssub.s32 %s19, %s26
    %s33 = sor.u32 %s31, %s32
    %p34 = scmp.eq.s32.totalorder %s33, 0
    %s36 = sadd.s32 %s35, 1
    %s37 = scalar_select %p34, %s35, %s36
    %p40 = pneg %p34
    %p41 = scmp.eq.s32.totalorder %s11, 3
    %p42 = por %p40, %p41
    %p43 = scmp.ne.s32.totalorder %s35, %s38
    %p44 = scmp.eq.s32.totalorder %s11, 0
    %p45 = por %p43, %p44
    %p46 = scmp.ne.s32.totalorder %s35, %s38
    %p47 = scmp.eq.s32.totalorder %s16, 3
    %p48 = por %p46, %p47
    %p49 = scmp.ne.s32.totalorder %s38, %s39
    %p50 = scmp.eq.s32.totalorder %s16, 0
    %p51 = por %p49, %p50
    %p52 = scmp.ne.s32.totalorder %s38, %s39
    %p53 = scmp.eq.s32.totalorder %s17, 3
    %p54 = por %p52, %p53
    %p56 = scmp.ne.s32.totalorder %s39, %s55
    %p57 = scmp.eq.s32.totalorder %s17, 0
    %p58 = por %p56, %p57
    %s60 = sadd.s32 %s59, 1
    %p63 = scmp.eq.s32.totalorder %s11, 3
    %p64 = scmp.ne.s32.totalorder %s59, %s61
    %p65 = scmp.eq.s32.totalorder %s11, 0
    %p66 = por %p64, %p65
    %p67 = scmp.ne.s32.totalorder %s59, %s61
    %p68 = scmp.eq.s32.totalorder %s16, 3
    %p69 = por %p67, %p68
    %p70 = scmp.ne.s32.totalorder %s61, %s62
    %p71 = scmp.eq.s32.totalorder %s16, 0
    %p72 = por %p70, %p71
    %p73 = scmp.ne.s32.totalorder %s61, %s62
    %p74 = scmp.eq.s32.totalorder %s17, 3
    %p75 = por %p73, %p74
    %p77 = scmp.ne.s32.totalorder %s62, %s76
    %p78 = scmp.eq.s32.totalorder %s17, 0
    %p79 = por %p77, %p78
    %s80 = ssub.s32 %s18, %s30
    %s81 = ssub.s32 %s19, %s26
    %s82 = sor.u32 %s80, %s81
    %p83 = scmp.eq.s32.totalorder %s82, 0
    %s85 = sadd.s32 %s84, 1
    %s86 = scalar_select %p83, %s84, %s85
    %p89 = pneg %p83
    %p90 = scmp.eq.s32.totalorder %s11, 3
    %p91 = por %p89, %p90
    %p92 = scmp.ne.s32.totalorder %s84, %s87
    %p93 = scmp.eq.s32.totalorder %s11, 0
    %p94 = por %p92, %p93
    %p95 = scmp.ne.s32.totalorder %s84, %s87
    %p96 = scmp.eq.s32.totalorder %s16, 3
    %p97 = por %p95, %p96
    %p98 = scmp.ne.s32.totalorder %s87, %s88
    %p99 = scmp.eq.s32.totalorder %s16, 0
    %p100 = por %p98, %p99
    %p101 = scmp.ne.s32.totalorder %s87, %s88
    %p102 = scmp.eq.s32.totalorder %s17, 3
    %p103 = por %p101, %p102
    %p105 = scmp.ne.s32.totalorder %s88, %s104
    %p106 = scmp.eq.s32.totalorder %s17, 0
    %p107 = por %p105, %p106
    %s109 = sadd.s32 %s108, 1
    %p112 = scmp.eq.s32.totalorder %s11, 3
    %p113 = scmp.ne.s32.totalorder %s108, %s110
    %p114 = scmp.eq.s32.totalorder %s11, 0
    %p115 = por %p113, %p114
    %p116 = scmp.ne.s32.totalorder %s108, %s110
    %p117 = scmp.eq.s32.totalorder %s16, 3
    %p118 = por %p116, %p117
    %p119 = scmp.ne.s32.totalorder %s110, %s111
    %p120 = scmp.eq.s32.totalorder %s16, 0
    %p121 = por %p119, %p120
    %p122 = scmp.ne.s32.totalorder %s110, %s111
    %p123 = scmp.eq.s32.totalorder %s17, 3
    %p124 = por %p122, %p123
    %p126 = scmp.ne.s32.totalorder %s111, %s125
    %p127 = scmp.eq.s32.totalorder %s17, 0
    %p128 = por %p126, %p127
    %s130 = sadd.s32 %s129, 1
    %p133 = scmp.eq.s32.totalorder %s11, 3
    %p134 = scmp.ne.s32.totalorder %s129, %s131
    %p135 = scmp.eq.s32.totalorder %s11, 0
    %p136 = por %p134, %p135
    %p137 = scmp.ne.s32.totalorder %s129, %s131
    %p138 = scmp.eq.s32.totalorder %s16, 3
    %p139 = por %p137, %p138
    %p140 = scmp.ne.s32.totalorder %s131, %s132
    %p141 = scmp.eq.s32.totalorder %s16, 0
    %p142 = por %p140, %p141
    %p143 = scmp.ne.s32.totalorder %s131, %s132
    %p144 = scmp.eq.s32.totalorder %s17, 3
    %p145 = por %p143, %p144
    %p147 = scmp.ne.s32.totalorder %s132, %s146
    %p148 = scmp.eq.s32.totalorder %s17, 0
    %p149 = por %p147, %p148
    %s150 = ssub.s32 %s18, %s30
    %s151 = ssub.s32 %s19, %s26
    %s152 = sor.u32 %s150, %s151
    %p153 = scmp.eq.s32.totalorder %s152, 0
    %s155 = sadd.s32 %s154, 1
    %s156 = scalar_select %p153, %s154, %s155
    %p159 = pneg %p153
    %p160 = scmp.eq.s32.totalorder %s11, 3
    %p161 = por %p159, %p160
    %p162 = scmp.ne.s32.totalorder %s154, %s157
    %p163 = scmp.eq.s32.totalorder %s11, 0
    %p164 = por %p162, %p163
    %p165 = scmp.ne.s32.totalorder %s154, %s157
    %p166 = scmp.eq.s32.totalorder %s16, 3
    %p167 = por %p165, %p166
    %p168 = scmp.ne.s32.totalorder %s157, %s158
    %p169 = scmp.eq.s32.totalorder %s16, 0
    %p170 = por %p168, %p169
    %p171 = scmp.ne.s32.totalorder %s157, %s158
    %p172 = scmp.eq.s32.totalorder %s17, 3
    %p173 = por %p171, %p172
    %p175 = scmp.ne.s32.totalorder %s158, %s174
    %p176 = scmp.eq.s32.totalorder %s17, 0
    %p177 = por %p175, %p176
    %p178 = scmp.le.s32.totalorder 1, %s11
    %p179 = scmp.lt.s32.totalorder %s11, 5
    %p180 = pnand %p178, %p179
    %p181 = pneg %p180
    // Predicated region
    $region9: #{tpu_custom_call.1} parent=5 // pred_check
      _
    $region10: #{tpu_custom_call.1} parent=5 // pred_check_branch
      %183 = sbr.rel (%p180) target = $region12
    $region11: #{tpu_custom_call.1} parent=5 // pred_region
      %s184 = ssub.s32 %s11, 1
      // Predicated region
      $region13: #{tpu_custom_call.1} parent=11 // pred_check
        %p185 = pneg %p72
      $region14: #{tpu_custom_call.1} parent=11 // pred_check_branch
        %187 = sbr.rel (%p185) target = $region16
      $region15: #{tpu_custom_call.1} parent=11 // pred_region
        _
      $region16: #{tpu_custom_call.1} parent=11 // pred_fallthru
        _
      // Predicated region
      $region17: #{tpu_custom_call.1} parent=11 // pred_check
        %p188 = pneg %p121
      $region18: #{tpu_custom_call.1} parent=11 // pred_check_branch
        %190 = sbr.rel (%p188) target = $region20
      $region19: #{tpu_custom_call.1} parent=11 // pred_region
        _
      $region20: #{tpu_custom_call.1} parent=11 // pred_fallthru
        _
      // Predicated region
      $region21: #{tpu_custom_call.1} parent=11 // pred_check
        %p191 = pneg %p142
      $region22: #{tpu_custom_call.1} parent=11 // pred_check_branch
        %193 = sbr.rel (%p191) target = $region24
      $region23: #{tpu_custom_call.1} parent=11 // pred_region
        _
      $region24: #{tpu_custom_call.1} parent=11 // pred_fallthru
        _
    $region12: #{tpu_custom_call.1} parent=5 // pred_fallthru
      _
    %p194 = scmp.lt.s32.totalorder %s11, 4
    // Predicated region
    $region25: #{tpu_custom_call.1} parent=5 // pred_check
      %p195 = pneg %p194
    $region26: #{tpu_custom_call.1} parent=5 // pred_check_branch
      %197 = sbr.rel (%p195) target = $region28
    $region27: #{tpu_custom_call.1} parent=5 // pred_region
      // Predicated region
      $region29: #{tpu_custom_call.1} parent=27 // pred_check
        %p198 = pneg %p45
      $region30: #{tpu_custom_call.1} parent=27 // pred_check_branch
        %200 = sbr.rel (%p198) target = $region32
      $region31: #{tpu_custom_call.1} parent=27 // pred_region
        %p201 = scmp.lt.s32.totalorder %s18, 1
        %s202 = scalar_select %p201, %s18, 1
        %p203 = scmp.lt.s32.totalorder %s19, 1
        %s204 = scalar_select %p203, %s19, 1
        %s205 = smul.addr %s204, 30
        %s206 = smul.addr %s202, 60
        %s207 = sadd.s32 %s205, %s206
        %s208 = smul.addr %s207, 8
        %s209 = scalar_lea.vmem %s0, %s208
      $region32: #{tpu_custom_call.1} parent=27 // pred_fallthru
        _
      // Predicated region
      $region33: #{tpu_custom_call.1} parent=27 // pred_check
        %p210 = pneg %p94
      $region34: #{tpu_custom_call.1} parent=27 // pred_check_branch
        %212 = sbr.rel (%p210) target = $region36
      $region35: #{tpu_custom_call.1} parent=27 // pred_region
        %s213 = smul.u32 8, %s19
        %p214 = scmp.lt.s32.totalorder %s18, 1
        %s215 = scalar_select %p214, %s18, 1
        %p216 = scmp.lt.s32.totalorder %s213, 15
        %s217 = scalar_select %p216, %s213, 15
        %s218 = smul.addr %s217, 2
        %s219 = smul.addr %s215, 32
        %s220 = sadd.s32 %s218, %s219
        %s221 = smul.addr %s220, 8
        %s222 = scalar_lea.vmem %s2, %s221
        %s223 = smul.u32 8, %s19
      $region36: #{tpu_custom_call.1} parent=27 // pred_fallthru
        _
    $region28: #{tpu_custom_call.1} parent=5 // pred_fallthru
      _
    %p224 = scmp.le.s32.totalorder 1, %s11
    %p225 = scmp.lt.s32.totalorder %s11, 5
    %p226 = pnand %p224, %p225
    %p227 = pneg %p226
    // Predicated region
    $region37: #{tpu_custom_call.1} parent=5 // pred_check
      _
    $region38: #{tpu_custom_call.1} parent=5 // pred_check_branch
      %229 = sbr.rel (%p226) target = $region40
    $region39: #{tpu_custom_call.1} parent=5 // pred_region
      %s230 = ssub.s32 %s11, 1
      %p231 = scmp.lt.s32.totalorder %s20, 1
      %s232 = scalar_select %p231, %s20, 1
      %p233 = scmp.lt.s32.totalorder %s21, 1
      %s234 = scalar_select %p233, %s21, 1
      %s235 = smul.addr %s234, 30
      %s236 = smul.addr %s232, 60
      %s237 = sadd.s32 %s235, %s236
      %s238 = smul.addr %s237, 8
      %s239 = scalar_lea.vmem %s0, %s238
      %p240 = pneg %p51
      %p241 = pneg %p48
      %p242 = pneg %p72
      %p243 = pneg %p69
      %s244 = smul.u32 8, %s21
      %p245 = scmp.lt.s32.totalorder %s20, 1
      %s246 = scalar_select %p245, %s20, 1
      %p247 = scmp.lt.s32.totalorder %s244, 15
      %s248 = scalar_select %p247, %s244, 15
      %s249 = smul.addr %s248, 2
      %s250 = smul.addr %s246, 32
      %s251 = sadd.s32 %s249, %s250
      %s252 = smul.addr %s251, 8
      %s253 = scalar_lea.vmem %s2, %s252
      %p254 = pneg %p100
      %p255 = pneg %p97
      %p256 = pneg %p121
      %p257 = pneg %p118
      %p258 = pneg %p142
      %p259 = pneg %p139
      %p260 = pneg %p170
      %p261 = pneg %p167
      %s262 = smul.u32 8, %s21
      %p263 = scmp.lt.s32.totalorder %s20, 1
      %s264 = scalar_select %p263, %s20, 1
      %p265 = scmp.lt.s32.totalorder %s262, 15
      %s266 = scalar_select %p265, %s262, 15
      %s267 = smul.addr %s266, 2
      %s268 = smul.addr %s264, 32
      %s269 = sadd.s32 %s267, %s268
      %s270 = smul.addr %s269, 8
      %s271 = scalar_lea.vmem %s5, %s270
      %p272 = scmp.lt.s32.totalorder %s20, 1
      %s273 = scalar_select %p272, %s20, 1
      %p274 = scmp.lt.s32.totalorder %s21, 1
      %s275 = scalar_select %p274, %s21, 1
      %s276 = smul.addr %s275, 30
      %s277 = smul.addr %s273, 60
      %s278 = sadd.s32 %s276, %s277
      %s279 = smul.addr %s278, 8
      %s280 = scalar_lea.vmem %s0, %s279
      %s281 = smul.u32 8, %s21
      %p282 = scmp.lt.s32.totalorder %s20, 1
      %s283 = scalar_select %p282, %s20, 1
      %p284 = scmp.lt.s32.totalorder %s281, 15
      %s285 = scalar_select %p284, %s281, 15
      %s286 = smul.addr %s285, 2
      %s287 = smul.addr %s283, 32
      %s288 = sadd.s32 %s286, %s287
      %s289 = smul.addr %s288, 8
      %s290 = scalar_lea.vmem %s2, %s289
      %s291 = smul.u32 8, %s21
      %s292 = smul.u32 8, %s21
      %p293 = scmp.lt.s32.totalorder %s20, 1
      %s294 = scalar_select %p293, %s20, 1
      %p295 = scmp.lt.s32.totalorder %s292, 15
      %s296 = scalar_select %p295, %s292, 15
      %s297 = smul.addr %s296, 2
      %s298 = smul.addr %s294, 32
      %s299 = sadd.s32 %s297, %s298
      %s300 = smul.addr %s299, 8
      %s301 = scalar_lea.vmem %s5, %s300
      %s302 = smul.u32 8, %s21
      %v303 = vld [vmem:[%s280] sm:$0xff]
      %v304 = vld [vmem:[%s280 + $0x8] sm:$0xff]
      %v305 = vld [vmem:[%s280 + $0x10] sm:$0x3]
      %v306 = vld [vmem:[%s280 + $0x18] sm:$0xff]
      %v307 = vld [vmem:[%s280 + $0x20] sm:$0xff]
      %v308 = vld [vmem:[%s280 + $0x28] sm:$0x3]
      %v309 = vld [vmem:[%s280 + $0x30] sm:$0xff]
      %v310 = vld [vmem:[%s280 + $0x38] sm:$0xff]
      %v311 = vld [vmem:[%s280 + $0x40] sm:$0x3]
      %v312 = vld [vmem:[%s280 + $0x48] sm:$0xff]
      %v313 = vld [vmem:[%s280 + $0x50] sm:$0xff]
      %v314 = vld [vmem:[%s280 + $0x58] sm:$0x3]
      %v315 = vld [vmem:[%s280 + $0x60] sm:$0xff]
      %v316 = vld [vmem:[%s280 + $0x68] sm:$0xff]
      %v317 = vld [vmem:[%s280 + $0x70] sm:$0x3]
      %v318 = vld [vmem:[%s280 + $0x78] sm:$0xff]
      %v319 = vld [vmem:[%s280 + $0x80] sm:$0xff]
      %v320 = vld [vmem:[%s280 + $0x88] sm:$0x3]
      %v321 = vld [vmem:[%s280 + $0x90] sm:$0xff]
      %v322 = vld [vmem:[%s280 + $0x98] sm:$0xff]
      %v323 = vld [vmem:[%s280 + $0xa0] sm:$0x3]
      %v324 = vld [vmem:[%s280 + $0xa8] sm:$0xff]
      %v325 = vld [vmem:[%s280 + $0xb0] sm:$0xff]
      %v326 = vld [vmem:[%s280 + $0xb8] sm:$0x3]
      %v327 = vld [vmem:[%s280 + $0xc0] sm:$0xff]
      %v328 = vld [vmem:[%s280 + $0xc8] sm:$0xff]
      %v329 = vld [vmem:[%s280 + $0xd0] sm:$0x3]
      %v330 = vld [vmem:[%s280 + $0xd8] sm:$0xff]
      %v331 = vld [vmem:[%s280 + $0xe0] sm:$0xff]
      %v332 = vld [vmem:[%s280 + $0xe8] sm:$0x3]
      %vm357 = vcmask 1046528
      %v358 = vrot.slane %v303, 1
      %v359 = vrot.slane %v304, 1
      %v360 = vsel %vm357, %v358, %v359
      %v361 = vrot.slane %v305, 1
      %v362 = vsel %vm357, %v359, %v361
      %v363 = vrot.slane %v306, 1
      %v364 = vrot.slane %v307, 1
      %v365 = vsel %vm357, %v363, %v364
      %v366 = vrot.slane %v308, 1
      %v367 = vsel %vm357, %v364, %v366
      %v368 = vrot.slane %v309, 1
      %v369 = vrot.slane %v310, 1
      %v370 = vsel %vm357, %v368, %v369
      %v371 = vrot.slane %v311, 1
      %v372 = vsel %vm357, %v369, %v371
      %v373 = vrot.slane %v312, 1
      %v374 = vrot.slane %v313, 1
      %v375 = vsel %vm357, %v373, %v374
      %v376 = vrot.slane %v314, 1
      %v377 = vsel %vm357, %v374, %v376
      %v378 = vrot.slane %v315, 1
      %v379 = vrot.slane %v316, 1
      %v380 = vsel %vm357, %v378, %v379
      %v381 = vrot.slane %v317, 1
      %v382 = vsel %vm357, %v379, %v381
      %v383 = vrot.slane %v318, 1
      %v384 = vrot.slane %v319, 1
      %v385 = vsel %vm357, %v383, %v384
      %v386 = vrot.slane %v320, 1
      %v387 = vsel %vm357, %v384, %v386
      %v388 = vrot.slane %v321, 1
      %v389 = vrot.slane %v322, 1
      %v390 = vsel %vm357, %v388, %v389
      %v391 = vrot.slane %v323, 1
      %v392 = vsel %vm357, %v389, %v391
      %v393 = vrot.slane %v324, 1
      %v394 = vrot.slane %v325, 1
      %v395 = vsel %vm357, %v393, %v394
      %v396 = vrot.slane %v326, 1
      %v397 = vsel %vm357, %v394, %v396
      %vm398 = vcmask 1045504
      %v399 = vrot.slane %v303, 2
      %v400 = vrot.slane %v304, 2
      %v401 = vsel %vm398, %v399, %v400
      %v402 = vrot.slane %v305, 2
      %v403 = vsel %vm398, %v400, %v402
      %v404 = vrot.slane %v306, 2
      %v405 = vrot.slane %v307, 2
      %v406 = vsel %vm398, %v404, %v405
      %v407 = vrot.slane %v308, 2
      %v408 = vsel %vm398, %v405, %v407
      %v409 = vrot.slane %v309, 2
      %v410 = vrot.slane %v310, 2
      %v411 = vsel %vm398, %v409, %v410
      %v412 = vrot.slane %v311, 2
      %v413 = vsel %vm398, %v410, %v412
      %v414 = vrot.slane %v312, 2
      %v415 = vrot.slane %v313, 2
      %v416 = vsel %vm398, %v414, %v415
      %v417 = vrot.slane %v314, 2
      %v418 = vsel %vm398, %v415, %v417
      %v419 = vrot.slane %v315, 2
      %v420 = vrot.slane %v316, 2
      %v421 = vsel %vm398, %v419, %v420
      %v422 = vrot.slane %v317, 2
      %v423 = vsel %vm398, %v420, %v422
      %v424 = vrot.slane %v318, 2
      %v425 = vrot.slane %v319, 2
      %v426 = vsel %vm398, %v424, %v425
      %v427 = vrot.slane %v320, 2
      %v428 = vsel %vm398, %v425, %v427
      %v429 = vrot.slane %v321, 2
      %v430 = vrot.slane %v322, 2
      %v431 = vsel %vm398, %v429, %v430
      %v432 = vrot.slane %v323, 2
      %v433 = vsel %vm398, %v430, %v432
      %v434 = vrot.slane %v324, 2
      %v435 = vrot.slane %v325, 2
      %v436 = vsel %vm398, %v434, %v435
      %v437 = vrot.slane %v326, 2
      %v438 = vsel %vm398, %v435, %v437
      %v442 = vrot.slane %v327, 1
      %v443 = vrot.slane %v328, 1
      %v444 = vsel %vm357, %v442, %v443
      %v445 = vrot.slane %v329, 1
      %v446 = vsel %vm357, %v443, %v445
      %v447 = vrot.slane %v327, 2
      %v448 = vrot.slane %v328, 2
      %v449 = vsel %vm398, %v447, %v448
      %v450 = vrot.slane %v329, 2
      %v451 = vsel %vm398, %v448, %v450
      %v455 = vrot.slane %v330, 1
      %v456 = vrot.slane %v331, 1
      %v457 = vsel %vm357, %v455, %v456
      %v458 = vrot.slane %v332, 1
      %v459 = vsel %vm357, %v456, %v458
      %v460 = vrot.slane %v330, 2
      %v461 = vrot.slane %v331, 2
      %v462 = vsel %vm398, %v460, %v461
      %v463 = vrot.slane %v332, 2
      %v464 = vsel %vm398, %v461, %v463
      %465 = vrot.lane.b32.xlu0 %v360, 4
      %v466 = vpop.permute.xlu0 %465
      %467 = vrot.lane.b32.xlu0 %v362, 4
      %v468 = vpop.permute.xlu0 %467
      %469 = vrot.lane.b32.xlu0 %v365, 4
      %v470 = vpop.permute.xlu0 %469
      %471 = vrot.lane.b32.xlu0 %v367, 4
      %v472 = vpop.permute.xlu0 %471
      %473 = vrot.lane.b32.xlu0 %v370, 4
      %v474 = vpop.permute.xlu0 %473
      %475 = vrot.lane.b32.xlu0 %v372, 4
      %v476 = vpop.permute.xlu0 %475
      %477 = vrot.lane.b32.xlu0 %v375, 4
      %v478 = vpop.permute.xlu0 %477
      %479 = vrot.lane.b32.xlu0 %v377, 4
      %v480 = vpop.permute.xlu0 %479
      %481 = vrot.lane.b32.xlu0 %v380, 4
      %v482 = vpop.permute.xlu0 %481
      %483 = vrot.lane.b32.xlu0 %v382, 4
      %v484 = vpop.permute.xlu0 %483
      %485 = vrot.lane.b32.xlu0 %v385, 4
      %v486 = vpop.permute.xlu0 %485
      %487 = vrot.lane.b32.xlu0 %v387, 4
      %v488 = vpop.permute.xlu0 %487
      %489 = vrot.lane.b32.xlu0 %v390, 4
      %v490 = vpop.permute.xlu0 %489
      %491 = vrot.lane.b32.xlu0 %v392, 4
      %v492 = vpop.permute.xlu0 %491
      %493 = vrot.lane.b32.xlu0 %v395, 4
      %v494 = vpop.permute.xlu0 %493
      %495 = vrot.lane.b32.xlu0 %v397, 4
      %v496 = vpop.permute.xlu0 %495
      %513 = vrot.lane.b32.xlu0 %v401, 8
      %v514 = vpop.permute.xlu0 %513
      %515 = vrot.lane.b32.xlu0 %v403, 8
      %v516 = vpop.permute.xlu0 %515
      %517 = vrot.lane.b32.xlu0 %v406, 8
      %v518 = vpop.permute.xlu0 %517
      %519 = vrot.lane.b32.xlu0 %v408, 8
      %v520 = vpop.permute.xlu0 %519
      %521 = vrot.lane.b32.xlu0 %v411, 8
      %v522 = vpop.permute.xlu0 %521
      %523 = vrot.lane.b32.xlu0 %v413, 8
      %v524 = vpop.permute.xlu0 %523
      %525 = vrot.lane.b32.xlu0 %v416, 8
      %v526 = vpop.permute.xlu0 %525
      %527 = vrot.lane.b32.xlu0 %v418, 8
      %v528 = vpop.permute.xlu0 %527
      %529 = vrot.lane.b32.xlu0 %v421, 8
      %v530 = vpop.permute.xlu0 %529
      %531 = vrot.lane.b32.xlu0 %v423, 8
      %v532 = vpop.permute.xlu0 %531
      %533 = vrot.lane.b32.xlu0 %v426, 8
      %v534 = vpop.permute.xlu0 %533
      %535 = vrot.lane.b32.xlu0 %v428, 8
      %v536 = vpop.permute.xlu0 %535
      %537 = vrot.lane.b32.xlu0 %v431, 8
      %v538 = vpop.permute.xlu0 %537
      %539 = vrot.lane.b32.xlu0 %v433, 8
      %v540 = vpop.permute.xlu0 %539
      %541 = vrot.lane.b32.xlu0 %v436, 8
      %v542 = vpop.permute.xlu0 %541
      %543 = vrot.lane.b32.xlu0 %v438, 8
      %v544 = vpop.permute.xlu0 %543
      %561 = vrot.lane.b32.xlu0 %v306, 12
      %v562 = vpop.permute.xlu0 %561
      %563 = vrot.lane.b32.xlu0 %v307, 12
      %v564 = vpop.permute.xlu0 %563
      %565 = vrot.lane.b32.xlu0 %v309, 12
      %v566 = vpop.permute.xlu0 %565
      %567 = vrot.lane.b32.xlu0 %v310, 12
      %v568 = vpop.permute.xlu0 %567
      %569 = vrot.lane.b32.xlu0 %v312, 12
      %v570 = vpop.permute.xlu0 %569
      %571 = vrot.lane.b32.xlu0 %v313, 12
      %v572 = vpop.permute.xlu0 %571
      %573 = vrot.lane.b32.xlu0 %v315, 12
      %v574 = vpop.permute.xlu0 %573
      %575 = vrot.lane.b32.xlu0 %v316, 12
      %v576 = vpop.permute.xlu0 %575
      %577 = vrot.lane.b32.xlu0 %v318, 12
      %v578 = vpop.permute.xlu0 %577
      %579 = vrot.lane.b32.xlu0 %v319, 12
      %v580 = vpop.permute.xlu0 %579
      %581 = vrot.lane.b32.xlu0 %v321, 12
      %v582 = vpop.permute.xlu0 %581
      %583 = vrot.lane.b32.xlu0 %v322, 12
      %v584 = vpop.permute.xlu0 %583
      %585 = vrot.lane.b32.xlu0 %v324, 12
      %v586 = vpop.permute.xlu0 %585
      %587 = vrot.lane.b32.xlu0 %v325, 12
      %v588 = vpop.permute.xlu0 %587
      %589 = vrot.lane.b32.xlu0 %v327, 12
      %v590 = vpop.permute.xlu0 %589
      %591 = vrot.lane.b32.xlu0 %v328, 12
      %v592 = vpop.permute.xlu0 %591
      %609 = vrot.lane.b32.xlu0 %v365, 16
      %v610 = vpop.permute.xlu0 %609
      %611 = vrot.lane.b32.xlu0 %v367, 16
      %v612 = vpop.permute.xlu0 %611
      %613 = vrot.lane.b32.xlu0 %v370, 16
      %v614 = vpop.permute.xlu0 %613
      %615 = vrot.lane.b32.xlu0 %v372, 16
      %v616 = vpop.permute.xlu0 %615
      %617 = vrot.lane.b32.xlu0 %v375, 16
      %v618 = vpop.permute.xlu0 %617
      %619 = vrot.lane.b32.xlu0 %v377, 16
      %v620 = vpop.permute.xlu0 %619
      %621 = vrot.lane.b32.xlu0 %v380, 16
      %v622 = vpop.permute.xlu0 %621
      %623 = vrot.lane.b32.xlu0 %v382, 16
      %v624 = vpop.permute.xlu0 %623
      %625 = vrot.lane.b32.xlu0 %v385, 16
      %v626 = vpop.permute.xlu0 %625
      %627 = vrot.lane.b32.xlu0 %v387, 16
      %v628 = vpop.permute.xlu0 %627
      %629 = vrot.lane.b32.xlu0 %v390, 16
      %v630 = vpop.permute.xlu0 %629
      %631 = vrot.lane.b32.xlu0 %v392, 16
      %v632 = vpop.permute.xlu0 %631
      %633 = vrot.lane.b32.xlu0 %v395, 16
      %v634 = vpop.permute.xlu0 %633
      %635 = vrot.lane.b32.xlu0 %v397, 16
      %v636 = vpop.permute.xlu0 %635
      %637 = vrot.lane.b32.xlu0 %v444, 16
      %v638 = vpop.permute.xlu0 %637
      %639 = vrot.lane.b32.xlu0 %v446, 16
      %v640 = vpop.permute.xlu0 %639
      %657 = vrot.lane.b32.xlu0 %v406, 20
      %v658 = vpop.permute.xlu0 %657
      %659 = vrot.lane.b32.xlu0 %v408, 20
      %v660 = vpop.permute.xlu0 %659
      %661 = vrot.lane.b32.xlu0 %v411, 20
      %v662 = vpop.permute.xlu0 %661
      %663 = vrot.lane.b32.xlu0 %v413, 20
      %v664 = vpop.permute.xlu0 %663
      %665 = vrot.lane.b32.xlu0 %v416, 20
      %v666 = vpop.permute.xlu0 %665
      %667 = vrot.lane.b32.xlu0 %v418, 20
      %v668 = vpop.permute.xlu0 %667
      %669 = vrot.lane.b32.xlu0 %v421, 20
      %v670 = vpop.permute.xlu0 %669
      %671 = vrot.lane.b32.xlu0 %v423, 20
      %v672 = vpop.permute.xlu0 %671
      %673 = vrot.lane.b32.xlu0 %v426, 20
      %v674 = vpop.permute.xlu0 %673
      %675 = vrot.lane.b32.xlu0 %v428, 20
      %v676 = vpop.permute.xlu0 %675
      %677 = vrot.lane.b32.xlu0 %v431, 20
      %v678 = vpop.permute.xlu0 %677
      %679 = vrot.lane.b32.xlu0 %v433, 20
      %v680 = vpop.permute.xlu0 %679
      %681 = vrot.lane.b32.xlu0 %v436, 20
      %v682 = vpop.permute.xlu0 %681
      %683 = vrot.lane.b32.xlu0 %v438, 20
      %v684 = vpop.permute.xlu0 %683
      %685 = vrot.lane.b32.xlu0 %v449, 20
      %v686 = vpop.permute.xlu0 %685
      %687 = vrot.lane.b32.xlu0 %v451, 20
      %v688 = vpop.permute.xlu0 %687
      %705 = vrot.lane.b32.xlu0 %v309, 24
      %v706 = vpop.permute.xlu0 %705
      %707 = vrot.lane.b32.xlu0 %v310, 24
      %v708 = vpop.permute.xlu0 %707
      %709 = vrot.lane.b32.xlu0 %v312, 24
      %v710 = vpop.permute.xlu0 %709
      %711 = vrot.lane.b32.xlu0 %v313, 24
      %v712 = vpop.permute.xlu0 %711
      %713 = vrot.lane.b32.xlu0 %v315, 24
      %v714 = vpop.permute.xlu0 %713
      %715 = vrot.lane.b32.xlu0 %v316, 24
      %v716 = vpop.permute.xlu0 %715
      %717 = vrot.lane.b32.xlu0 %v318, 24
      %v718 = vpop.permute.xlu0 %717
      %719 = vrot.lane.b32.xlu0 %v319, 24
      %v720 = vpop.permute.xlu0 %719
      %721 = vrot.lane.b32.xlu0 %v321, 24
      %v722 = vpop.permute.xlu0 %721
      %723 = vrot.lane.b32.xlu0 %v322, 24
      %v724 = vpop.permute.xlu0 %723
      %725 = vrot.lane.b32.xlu0 %v324, 24
      %v726 = vpop.permute.xlu0 %725
      %727 = vrot.lane.b32.xlu0 %v325, 24
      %v728 = vpop.permute.xlu0 %727
      %729 = vrot.lane.b32.xlu0 %v327, 24
      %v730 = vpop.permute.xlu0 %729
      %731 = vrot.lane.b32.xlu0 %v328, 24
      %v732 = vpop.permute.xlu0 %731
      %733 = vrot.lane.b32.xlu0 %v330, 24
      %v734 = vpop.permute.xlu0 %733
      %735 = vrot.lane.b32.xlu0 %v331, 24
      %v736 = vpop.permute.xlu0 %735
      %753 = vrot.lane.b32.xlu0 %v370, 28
      %v754 = vpop.permute.xlu0 %753
      %755 = vrot.lane.b32.xlu0 %v372, 28
      %v756 = vpop.permute.xlu0 %755
      %757 = vrot.lane.b32.xlu0 %v375, 28
      %v758 = vpop.permute.xlu0 %757
      %759 = vrot.lane.b32.xlu0 %v377, 28
      %v760 = vpop.permute.xlu0 %759
      %761 = vrot.lane.b32.xlu0 %v380, 28
      %v762 = vpop.permute.xlu0 %761
      %763 = vrot.lane.b32.xlu0 %v382, 28
      %v764 = vpop.permute.xlu0 %763
      %765 = vrot.lane.b32.xlu0 %v385, 28
      %v766 = vpop.permute.xlu0 %765
      %767 = vrot.lane.b32.xlu0 %v387, 28
      %v768 = vpop.permute.xlu0 %767
      %769 = vrot.lane.b32.xlu0 %v390, 28
      %v770 = vpop.permute.xlu0 %769
      %771 = vrot.lane.b32.xlu0 %v392, 28
      %v772 = vpop.permute.xlu0 %771
      %773 = vrot.lane.b32.xlu0 %v395, 28
      %v774 = vpop.permute.xlu0 %773
      %775 = vrot.lane.b32.xlu0 %v397, 28
      %v776 = vpop.permute.xlu0 %775
      %777 = vrot.lane.b32.xlu0 %v444, 28
      %v778 = vpop.permute.xlu0 %777
      %779 = vrot.lane.b32.xlu0 %v446, 28
      %v780 = vpop.permute.xlu0 %779
      %781 = vrot.lane.b32.xlu0 %v457, 28
      %v782 = vpop.permute.xlu0 %781
      %783 = vrot.lane.b32.xlu0 %v459, 28
      %v784 = vpop.permute.xlu0 %783
      %801 = vrot.lane.b32.xlu0 %v411, 32
      %v802 = vpop.permute.xlu0 %801
      %803 = vrot.lane.b32.xlu0 %v413, 32
      %v804 = vpop.permute.xlu0 %803
      %805 = vrot.lane.b32.xlu0 %v416, 32
      %v806 = vpop.permute.xlu0 %805
      %807 = vrot.lane.b32.xlu0 %v418, 32
      %v808 = vpop.permute.xlu0 %807
      %809 = vrot.lane.b32.xlu0 %v421, 32
      %v810 = vpop.permute.xlu0 %809
      %811 = vrot.lane.b32.xlu0 %v423, 32
      %v812 = vpop.permute.xlu0 %811
      %813 = vrot.lane.b32.xlu0 %v426, 32
      %v814 = vpop.permute.xlu0 %813
      %815 = vrot.lane.b32.xlu0 %v428, 32
      %v816 = vpop.permute.xlu0 %815
      %817 = vrot.lane.b32.xlu0 %v431, 32
      %v818 = vpop.permute.xlu0 %817
      %819 = vrot.lane.b32.xlu0 %v433, 32
      %v820 = vpop.permute.xlu0 %819
      %821 = vrot.lane.b32.xlu0 %v436, 32
      %v822 = vpop.permute.xlu0 %821
      %823 = vrot.lane.b32.xlu0 %v438, 32
      %v824 = vpop.permute.xlu0 %823
      %825 = vrot.lane.b32.xlu0 %v449, 32
      %v826 = vpop.permute.xlu0 %825
      %827 = vrot.lane.b32.xlu0 %v451, 32
      %v828 = vpop.permute.xlu0 %827
      %829 = vrot.lane.b32.xlu0 %v462, 32
      %v830 = vpop.permute.xlu0 %829
      %831 = vrot.lane.b32.xlu0 %v464, 32
      %v832 = vpop.permute.xlu0 %831
      %vm849 = vcmask 31744
      %v850 = vsel %vm849, %v303, %v466
      %v851 = vsel %vm849, %v304, %v468
      %v852 = vsel %vm849, %v306, %v470
      %v853 = vsel %vm849, %v307, %v472
      %v854 = vsel %vm849, %v309, %v474
      %v855 = vsel %vm849, %v310, %v476
      %v856 = vsel %vm849, %v312, %v478
      %v857 = vsel %vm849, %v313, %v480
      %v858 = vsel %vm849, %v315, %v482
      %v859 = vsel %vm849, %v316, %v484
      %v860 = vsel %vm849, %v318, %v486
      %v861 = vsel %vm849, %v319, %v488
      %v862 = vsel %vm849, %v321, %v490
      %v863 = vsel %vm849, %v322, %v492
      %v864 = vsel %vm849, %v324, %v494
      %v865 = vsel %vm849, %v325, %v496
      %vm866 = vcmask 64512
      %v867 = vsel %vm866, %v850, %v514
      %v868 = vsel %vm866, %v851, %v516
      %v869 = vsel %vm866, %v852, %v518
      %v870 = vsel %vm866, %v853, %v520
      %v871 = vsel %vm866, %v854, %v522
      %v872 = vsel %vm866, %v855, %v524
      %v873 = vsel %vm866, %v856, %v526
      %v874 = vsel %vm866, %v857, %v528
      %v875 = vsel %vm866, %v858, %v530
      %v876 = vsel %vm866, %v859, %v532
      %v877 = vsel %vm866, %v860, %v534
      %v878 = vsel %vm866, %v861, %v536
      %v879 = vsel %vm866, %v862, %v538
      %v880 = vsel %vm866, %v863, %v540
      %v881 = vsel %vm866, %v864, %v542
      %v882 = vsel %vm866, %v865, %v544
      %vm883 = vcmask 97280
      %v884 = vsel %vm883, %v867, %v562
      %v885 = vsel %vm883, %v868, %v564
      %v886 = vsel %vm883, %v869, %v566
      %v887 = vsel %vm883, %v870, %v568
      %v888 = vsel %vm883, %v871, %v570
      %v889 = vsel %vm883, %v872, %v572
      %v890 = vsel %vm883, %v873, %v574
      %v891 = vsel %vm883, %v874, %v576
      %v892 = vsel %vm883, %v875, %v578
      %v893 = vsel %vm883, %v876, %v580
      %v894 = vsel %vm883, %v877, %v582
      %v895 = vsel %vm883, %v878, %v584
      %v896 = vsel %vm883, %v879, %v586
      %v897 = vsel %vm883, %v880, %v588
      %v898 = vsel %vm883, %v881, %v590
      %v899 = vsel %vm883, %v882, %v592
      %vm900 = vcmask 130048
      %v901 = vsel %vm900, %v884, %v610
      %v902 = vsel %vm900, %v885, %v612
      %v903 = vsel %vm900, %v886, %v614
      %v904 = vsel %vm900, %v887, %v616
      %v905 = vsel %vm900, %v888, %v618
      %v906 = vsel %vm900, %v889, %v620
      %v907 = vsel %vm900, %v890, %v622
      %v908 = vsel %vm900, %v891, %v624
      %v909 = vsel %vm900, %v892, %v626
      %v910 = vsel %vm900, %v893, %v628
      %v911 = vsel %vm900, %v894, %v630
      %v912 = vsel %vm900, %v895, %v632
      %v913 = vsel %vm900, %v896, %v634
      %v914 = vsel %vm900, %v897, %v636
      %v915 = vsel %vm900, %v898, %v638
      %v916 = vsel %vm900, %v899, %v640
      %vm917 = vcmask 162816
      %v918 = vsel %vm917, %v901, %v658
      %v919 = vsel %vm917, %v902, %v660
      %v920 = vsel %vm917, %v903, %v662
      %v921 = vsel %vm917, %v904, %v664
      %v922 = vsel %vm917, %v905, %v666
      %v923 = vsel %vm917, %v906, %v668
      %v924 = vsel %vm917, %v907, %v670
      %v925 = vsel %vm917, %v908, %v672
      %v926 = vsel %vm917, %v909, %v674
      %v927 = vsel %vm917, %v910, %v676
      %v928 = vsel %vm917, %v911, %v678
      %v929 = vsel %vm917, %v912, %v680
      %v930 = vsel %vm917, %v913, %v682
      %v931 = vsel %vm917, %v914, %v684
      %v932 = vsel %vm917, %v915, %v686
      %v933 = vsel %vm917, %v916, %v688
      %vm934 = vcmask 195584
      %v935 = vsel %vm934, %v918, %v706
      %v936 = vsel %vm934, %v919, %v708
      %v937 = vsel %vm934, %v920, %v710
      %v938 = vsel %vm934, %v921, %v712
      %v939 = vsel %vm934, %v922, %v714
      %v940 = vsel %vm934, %v923, %v716
      %v941 = vsel %vm934, %v924, %v718
      %v942 = vsel %vm934, %v925, %v720
      %v943 = vsel %vm934, %v926, %v722
      %v944 = vsel %vm934, %v927, %v724
      %v945 = vsel %vm934, %v928, %v726
      %v946 = vsel %vm934, %v929, %v728
      %v947 = vsel %vm934, %v930, %v730
      %v948 = vsel %vm934, %v931, %v732
      %v949 = vsel %vm934, %v932, %v734
      %v950 = vsel %vm934, %v933, %v736
      %vm951 = vcmask 228352
      %v952 = vsel %vm951, %v935, %v754
      %v953 = vsel %vm951, %v936, %v756
      %v954 = vsel %vm951, %v937, %v758
      %v955 = vsel %vm951, %v938, %v760
      %v956 = vsel %vm951, %v939, %v762
      %v957 = vsel %vm951, %v940, %v764
      %v958 = vsel %vm951, %v941, %v766
      %v959 = vsel %vm951, %v942, %v768
      %v960 = vsel %vm951, %v943, %v770
      %v961 = vsel %vm951, %v944, %v772
      %v962 = vsel %vm951, %v945, %v774
      %v963 = vsel %vm951, %v946, %v776
      %v964 = vsel %vm951, %v947, %v778
      %v965 = vsel %vm951, %v948, %v780
      %v966 = vsel %vm951, %v949, %v782
      %v967 = vsel %vm951, %v950, %v784
      %vm968 = vcmask 261120
      %v969 = vsel %vm968, %v952, %v802
      %v970 = vsel %vm968, %v953, %v804
      %v971 = vsel %vm968, %v954, %v806
      %v972 = vsel %vm968, %v955, %v808
      %v973 = vsel %vm968, %v956, %v810
      %v974 = vsel %vm968, %v957, %v812
      %v975 = vsel %vm968, %v958, %v814
      %v976 = vsel %vm968, %v959, %v816
      %v977 = vsel %vm968, %v960, %v818
      %v978 = vsel %vm968, %v961, %v820
      %v979 = vsel %vm968, %v962, %v822
      %v980 = vsel %vm968, %v963, %v824
      %v981 = vsel %vm968, %v964, %v826
      %v982 = vsel %vm968, %v965, %v828
      %v983 = vsel %vm968, %v966, %v830
      %v984 = vsel %vm968, %v967, %v832
      %v985 = vld [vmem:[%s1] sm:$0xff]
      %v986 = vld [vmem:[%s1 + $0x8] sm:$0xff]
      %v987 = vld [vmem:[%s1 + $0x10] sm:$0xff]
      %v988 = vld [vmem:[%s1 + $0x18] sm:$0xff]
      %v989 = vld [vmem:[%s1 + $0x20] sm:$0xf]
      %vm990 = vcmask 293888
      %v992 = vsel %vm990, %v969, 0
      %v995 = vsel %vm990, %v970, 0
      %v998 = vsel %vm990, %v971, 0
      %v1001 = vsel %vm990, %v972, 0
      %v1004 = vsel %vm990, %v973, 0
      %v1007 = vsel %vm990, %v974, 0
      %v1010 = vsel %vm990, %v975, 0
      %v1013 = vsel %vm990, %v976, 0
      %v1016 = vsel %vm990, %v977, 0
      %v1019 = vsel %vm990, %v978, 0
      %v1022 = vsel %vm990, %v979, 0
      %v1025 = vsel %vm990, %v980, 0
      %v1028 = vsel %vm990, %v981, 0
      %v1031 = vsel %vm990, %v982, 0
      %v1034 = vsel %vm990, %v983, 0
      %v1037 = vsel %vm990, %v984, 0
      %vm1039 = vcmask 1043456
      %v1041 = vsel %vm1039, %v989, 0
      %1043 = vmatpush.msra.mxu0 0.0
      %1044 = vmatpush.msra.mxu0 0.0
      %1045 = vmatpush.msra.mxu0 0.0
      %1046 = vmatpush.msra.mxu0 0.0
      %1047 = vmatpush.msra.mxu0 0.0
      %1048 = vmatpush.msra.mxu0 0.0
      %1049 = vmatpush.msra.mxu0 0.0
      %1050 = vmatpush.msra.mxu0 0.0
      %1051 = vmatpush.msra.mxu0 0.0
      %1052 = vmatpush.msra.mxu0 0.0
      %1053 = vmatpush.msra.mxu0 0.0
      %1054 = vmatpush.msra.mxu0 %v1041
      %1055 = vmatpush.msra.mxu0 %v988
      %1056 = vmatpush.msra.mxu0 %v987
      %1057 = vmatpush.msra.mxu0 %v986
      %1058 = vmatpush.msra.mxu0 %v985
      %1059 = vmatmul.f32.gmra.mxu0 %v992
      %v1060 = vpop.f32.mrf.mxu0
      %v1061 = vadd.f32 0.0, %v1060
      %1062 = vmatmul.f32.gmra.mxu0 %v995
      %v1063 = vpop.f32.mrf.mxu0
      %v1064 = vadd.f32 0.0, %v1063
      %1065 = vmatmul.f32.gmra.mxu0 %v998
      %v1066 = vpop.f32.mrf.mxu0
      %v1067 = vadd.f32 0.0, %v1066
      %1068 = vmatmul.f32.gmra.mxu0 %v1001
      %v1069 = vpop.f32.mrf.mxu0
      %v1070 = vadd.f32 0.0, %v1069
      %1071 = vmatmul.f32.gmra.mxu0 %v1004
      %v1072 = vpop.f32.mrf.mxu0
      %v1073 = vadd.f32 0.0, %v1072
      %1074 = vmatmul.f32.gmra.mxu0 %v1007
      %v1075 = vpop.f32.mrf.mxu0
      %v1076 = vadd.f32 0.0, %v1075
      %1077 = vmatmul.f32.gmra.mxu0 %v1010
      %v1078 = vpop.f32.mrf.mxu0
      %v1079 = vadd.f32 0.0, %v1078
      %1080 = vmatmul.f32.gmra.mxu0 %v1013
      %v1081 = vpop.f32.mrf.mxu0
      %v1082 = vadd.f32 0.0, %v1081
      %1083 = vmatmul.f32.gmra.mxu0 %v1016
      %v1084 = vpop.f32.mrf.mxu0
      %v1085 = vadd.f32 0.0, %v1084
      %1086 = vmatmul.f32.gmra.mxu0 %v1019
      %v1087 = vpop.f32.mrf.mxu0
      %v1088 = vadd.f32 0.0, %v1087
      %1089 = vmatmul.f32.gmra.mxu0 %v1022
      %v1090 = vpop.f32.mrf.mxu0
      %v1091 = vadd.f32 0.0, %v1090
      %1092 = vmatmul.f32.gmra.mxu0 %v1025
      %v1093 = vpop.f32.mrf.mxu0
      %v1094 = vadd.f32 0.0, %v1093
      %1095 = vmatmul.f32.gmra.mxu0 %v1028
      %v1096 = vpop.f32.mrf.mxu0
      %v1097 = vadd.f32 0.0, %v1096
      %1098 = vmatmul.f32.gmra.mxu0 %v1031
      %v1099 = vpop.f32.mrf.mxu0
      %v1100 = vadd.f32 0.0, %v1099
      %1101 = vmatmul.f32.gmra.mxu0 %v1034
      %v1102 = vpop.f32.mrf.mxu0
      %v1103 = vadd.f32 0.0, %v1102
      %1104 = vmatmul.f32.gmra.mxu0 %v1037
      %v1105 = vpop.f32.mrf.mxu0
      %v1106 = vadd.f32 0.0, %v1105
      %1107 = vdwg.mxu0
      %v1108 = vld [vmem:[%s3] sm:$0x1]
      %v1110 = vperm.slane %v1108, 0
      %v1112 = vmul.f32 %v1061, %v1110
      %v1113 = vmul.f32 %v1064, %v1110
      %v1114 = vmul.f32 %v1067, %v1110
      %v1115 = vmul.f32 %v1070, %v1110
      %v1116 = vmul.f32 %v1073, %v1110
      %v1117 = vmul.f32 %v1076, %v1110
      %v1118 = vmul.f32 %v1079, %v1110
      %v1119 = vmul.f32 %v1082, %v1110
      %v1120 = vmul.f32 %v1085, %v1110
      %v1121 = vmul.f32 %v1088, %v1110
      %v1122 = vmul.f32 %v1091, %v1110
      %v1123 = vmul.f32 %v1094, %v1110
      %v1124 = vmul.f32 %v1097, %v1110
      %v1125 = vmul.f32 %v1100, %v1110
      %v1126 = vmul.f32 %v1103, %v1110
      %v1127 = vmul.f32 %v1106, %v1110
      %v1128 = vld [vmem:[%s4] sm:$0x1]
      %v1130 = vperm.slane %v1128, 0
      %v1132 = vadd.f32 %v1112, %v1130
      %v1133 = vadd.f32 %v1113, %v1130
      %v1134 = vadd.f32 %v1114, %v1130
      %v1135 = vadd.f32 %v1115, %v1130
      %v1136 = vadd.f32 %v1116, %v1130
      %v1137 = vadd.f32 %v1117, %v1130
      %v1138 = vadd.f32 %v1118, %v1130
      %v1139 = vadd.f32 %v1119, %v1130
      %v1140 = vadd.f32 %v1120, %v1130
      %v1141 = vadd.f32 %v1121, %v1130
      %v1142 = vadd.f32 %v1122, %v1130
      %v1143 = vadd.f32 %v1123, %v1130
      %v1144 = vadd.f32 %v1124, %v1130
      %v1145 = vadd.f32 %v1125, %v1130
      %v1146 = vadd.f32 %v1126, %v1130
      %v1147 = vadd.f32 %v1127, %v1130
      %v1148 = vld [vmem:[%s290] sm:$0xff]
      %v1149 = vld [vmem:[%s290 + $0x8] sm:$0xff]
      %v1150 = vld [vmem:[%s290 + $0x10] sm:$0xff]
      %v1151 = vld [vmem:[%s290 + $0x18] sm:$0xff]
      %v1152 = vld [vmem:[%s290 + $0x20] sm:$0xff]
      %v1153 = vld [vmem:[%s290 + $0x28] sm:$0xff]
      %v1154 = vld [vmem:[%s290 + $0x30] sm:$0xff]
      %v1155 = vld [vmem:[%s290 + $0x38] sm:$0xff]
      %v1156 = vld [vmem:[%s290 + $0x40] sm:$0xff]
      %v1157 = vld [vmem:[%s290 + $0x48] sm:$0xff]
      %v1158 = vld [vmem:[%s290 + $0x50] sm:$0xff]
      %v1159 = vld [vmem:[%s290 + $0x58] sm:$0xff]
      %v1160 = vld [vmem:[%s290 + $0x60] sm:$0xff]
      %v1161 = vld [vmem:[%s290 + $0x68] sm:$0xff]
      %v1162 = vld [vmem:[%s290 + $0x70] sm:$0xff]
      %v1163 = vld [vmem:[%s290 + $0x78] sm:$0xff]
      %v1164 = vadd.f32 %v1132, %v1148
      %v1165 = vadd.f32 %v1133, %v1149
      %v1166 = vadd.f32 %v1134, %v1150
      %v1167 = vadd.f32 %v1135, %v1151
      %v1168 = vadd.f32 %v1136, %v1152
      %v1169 = vadd.f32 %v1137, %v1153
      %v1170 = vadd.f32 %v1138, %v1154
      %v1171 = vadd.f32 %v1139, %v1155
      %v1172 = vadd.f32 %v1140, %v1156
      %v1173 = vadd.f32 %v1141, %v1157
      %v1174 = vadd.f32 %v1142, %v1158
      %v1175 = vadd.f32 %v1143, %v1159
      %v1176 = vadd.f32 %v1144, %v1160
      %v1177 = vadd.f32 %v1145, %v1161
      %v1178 = vadd.f32 %v1146, %v1162
      %v1179 = vadd.f32 %v1147, %v1163
      %v1180 = vmax.f32 %v1164, 0.0
      %v1181 = vmax.f32 %v1165, 0.0
      %v1182 = vmax.f32 %v1166, 0.0
      %v1183 = vmax.f32 %v1167, 0.0
      %v1184 = vmax.f32 %v1168, 0.0
      %v1185 = vmax.f32 %v1169, 0.0
      %v1186 = vmax.f32 %v1170, 0.0
      %v1187 = vmax.f32 %v1171, 0.0
      %v1188 = vmax.f32 %v1172, 0.0
      %v1189 = vmax.f32 %v1173, 0.0
      %v1190 = vmax.f32 %v1174, 0.0
      %v1191 = vmax.f32 %v1175, 0.0
      %v1192 = vmax.f32 %v1176, 0.0
      %v1193 = vmax.f32 %v1177, 0.0
      %v1194 = vmax.f32 %v1178, 0.0
      %v1195 = vmax.f32 %v1179, 0.0
      %1196 = vst.msk [vmem:[%s301] sm:$0xff] %vm849, %v1180
      %1197 = vst.msk [vmem:[%s301 + $0x8] sm:$0xff] %vm849, %v1181
      %1198 = vst.msk [vmem:[%s301 + $0x10] sm:$0xff] %vm849, %v1182
      %1199 = vst.msk [vmem:[%s301 + $0x18] sm:$0xff] %vm849, %v1183
      %1200 = vst.msk [vmem:[%s301 + $0x20] sm:$0xff] %vm849, %v1184
      %1201 = vst.msk [vmem:[%s301 + $0x28] sm:$0xff] %vm849, %v1185
      %1202 = vst.msk [vmem:[%s301 + $0x30] sm:$0xff] %vm849, %v1186
      %1203 = vst.msk [vmem:[%s301 + $0x38] sm:$0xff] %vm849, %v1187
      %1204 = vst.msk [vmem:[%s301 + $0x40] sm:$0xff] %vm849, %v1188
      %1205 = vst.msk [vmem:[%s301 + $0x48] sm:$0xff] %vm849, %v1189
      %1206 = vst.msk [vmem:[%s301 + $0x50] sm:$0xff] %vm849, %v1190
      %1207 = vst.msk [vmem:[%s301 + $0x58] sm:$0xff] %vm849, %v1191
      %1208 = vst.msk [vmem:[%s301 + $0x60] sm:$0xff] %vm849, %v1192
      %1209 = vst.msk [vmem:[%s301 + $0x68] sm:$0xff] %vm849, %v1193
      %1210 = vst.msk [vmem:[%s301 + $0x70] sm:$0xff] %vm849, %v1194
      %1211 = vst.msk [vmem:[%s301 + $0x78] sm:$0xff] %vm849, %v1195
      %s1212 = smul.u32 8, %s21
      %p1213 = scmp.lt.s32.totalorder %s20, 1
      %s1214 = scalar_select %p1213, %s20, 1
      %p1215 = scmp.lt.s32.totalorder %s1212, 15
      %s1216 = scalar_select %p1215, %s1212, 15
      %s1217 = smul.addr %s1216, 2
      %s1218 = smul.addr %s1214, 32
      %s1219 = sadd.s32 %s1217, %s1218
      %s1220 = smul.addr %s1219, 8
      %s1221 = scalar_lea.vmem %s5, %s1220
      // Predicated region
      $region41: #{tpu_custom_call.1} parent=39 // pred_check
        %p1222 = pneg %p167
      $region42: #{tpu_custom_call.1} parent=39 // pred_check_branch
        %1224 = sbr.rel (%p1222) target = $region44
      $region43: #{tpu_custom_call.1} parent=39 // pred_region
        %s1225 = smul.u32 8, %s21
      $region44: #{tpu_custom_call.1} parent=39 // pred_fallthru
        _
    $region40: #{tpu_custom_call.1} parent=5 // pred_fallthru
      _
    %p1226 = scmp.le.s32.totalorder 2, %s11
    // Predicated region
    $region45: #{tpu_custom_call.1} parent=5 // pred_check
      %p1227 = pneg %p1226
    $region46: #{tpu_custom_call.1} parent=5 // pred_check_branch
      %1229 = sbr.rel (%p1227) target = $region48
    $region47: #{tpu_custom_call.1} parent=5 // pred_region
      %s1230 = ssub.s32 %s11, 2
      // Predicated region
      $region49: #{tpu_custom_call.1} parent=47 // pred_check
        %p1231 = pneg %p173
      $region50: #{tpu_custom_call.1} parent=47 // pred_check_branch
        %1233 = sbr.rel (%p1231) target = $region52
      $region51: #{tpu_custom_call.1} parent=47 // pred_region
        %s1234 = smul.u32 8, %s23
        %p1235 = scmp.lt.s32.totalorder %s22, 1
        %s1236 = scalar_select %p1235, %s22, 1
        %p1237 = scmp.lt.s32.totalorder %s1234, 15
        %s1238 = scalar_select %p1237, %s1234, 15
        %s1239 = smul.addr %s1238, 2
        %s1240 = smul.addr %s1236, 32
        %s1241 = sadd.s32 %s1239, %s1240
        %s1242 = smul.addr %s1241, 8
        %s1243 = scalar_lea.vmem %s5, %s1242
      $region52: #{tpu_custom_call.1} parent=47 // pred_fallthru
        _
    $region48: #{tpu_custom_call.1} parent=5 // pred_fallthru
      _
  $region6: #{tpu_custom_call.1} parent=0 // loop_footer
    %s15 = sadd.s32 1, %s11
  $region7: #{tpu_custom_call.1} parent=0 // loop_footer_branch
    %10 = sbr.rel target = $region3
  $region8: #{tpu_custom_call.1} parent=0 // loop_exit
    _

</llo_original>
